<compile_context>
chip_gen: v7x
topology: tpu7x:2x2x1
jax: 0.10.0
libtpu: 0.0.40
codegen_flags: <defaults>
</compile_context>

<pallas_src>
import math

import jax
import jax.numpy as jnp
from jax.experimental import pallas as pl
from jax.experimental.pallas import tpu as pltpu


def _round_up(n, m):
    return ((n + m - 1) // m) * m


def _round_down(n, m):
    return (n // m) * m


def _vmem_budget_bytes():
    """Generation-aware scoped-VMEM budget (leave headroom below physical)."""
    try:
        cap = pltpu.get_tpu_info().vmem_capacity_bytes
    except Exception:
        cap = 64 << 20  # conservative default (v7x physical VMEM)
    # ~3/4 of physical: 96 MiB on v5e/v6e (128 MiB), 48 MiB on v7x (64 MiB).
    return min((cap * 3) // 4, 96 << 20)


def _learnable_sigmoid_kernel(x_ref, slope_ref, beta_ref, o_ref):
    # x_ref:     (TILE_R, F_eff) tile in VMEM (lane-dense when F_eff % 128 == 0)
    # slope_ref: (1, F_eff) f32 in VMEM, resident across grid steps (index_map -> (0, 0))
    # beta_ref:  (1, 1) f32 scalar in SMEM
    beta = beta_ref[0, 0]
    x = x_ref[...].astype(jnp.float32)       # f32 math (native EUP path)
    z = slope_ref[...] * x                   # row-broadcast multiply (VPU)
    # sigmoid(z) == 0.5 * (tanh(0.5 * z) + 1): one EUP transcendental per
    # element (vs exp + exact reciprocal), and no inf intermediates.
    sig = 0.5 * (jnp.tanh(0.5 * z) + 1.0)
    o_ref[...] = (beta * sig).astype(o_ref.dtype)


def learnable_sigmoid(x, slope, beta=1.0, target_block_bytes=4 << 20):
    """x: (..., F) array, slope: (F,), beta: python/jax scalar."""
    orig_shape = x.shape
    F = orig_shape[-1]
    assert slope.shape == (F,)
    rows = math.prod(orig_shape[:-1]) if len(orig_shape) > 1 else 1
    itemsize = jnp.dtype(x.dtype).itemsize

    # --- lcm lane-density fold: pack `group` original rows into one folded row
    # so F_eff is a multiple of 128 (dense vst / full lanes).  Only when the
    # row count allows a copy-free reshape; otherwise fall back to group=1
    # (masked stores, but no padding copies).
    group = 1
    if F % 128 != 0:
        cand = math.lcm(F, 128) // F
        if rows % cand == 0 and F * cand <= 4096:
            group = cand
    F_eff = F * group
    folded_rows = rows // group  # exact by construction

    # --- Byte-budget tile sizing (multiple of 8 sublanes).
    tile_r = max(8, _round_down(target_block_bytes // (F_eff * itemsize), 8))
    # Keep >= ~4 grid steps so both v7x TensorCores get work ("parallel" axis);
    # harmless on v5e/v6e.
    quarter = max(8, _round_up(pl.cdiv(folded_rows, 4), 8))
    tile_r = min(tile_r, quarter)
    # Never larger than the (sublane-rounded) problem itself.
    tile_r = min(tile_r, _round_up(folded_rows, 8))
    # Fit double-buffered in + out (~4x block) inside the VMEM budget.
    vmem_budget = _vmem_budget_bytes()
    max_tile_vmem = _round_down((vmem_budget - (2 << 20)) // (4 * F_eff * itemsize), 8)
    tile_r = max(8, min(tile_r, max(max_tile_vmem, 8)))

    block_bytes = tile_r * F_eff * itemsize
    vmem_limit = int(min(vmem_budget, 4 * block_bytes + (4 << 20)))

    # Trivial contiguous reshapes only — no pad, no copy.
    x_folded = x.reshape(folded_rows, F_eff)

    # slope tiled with period F: folded element k multiplies slope[k % F].
    slope_eff = jnp.tile(slope.astype(jnp.float32), group).reshape(1, F_eff)
    beta_arr = jnp.asarray(beta, dtype=jnp.float32).reshape(1, 1)

    grid = (pl.cdiv(folded_rows, tile_r),)  # final partial block masked by Pallas

    n_elems = rows * F
    cost = pl.CostEstimate(
        flops=6 * n_elems,
        transcendentals=n_elems,
        bytes_accessed=2 * n_elems * itemsize + F_eff * 4 + 4,
    )

    out_folded = pl.pallas_call(
        _learnable_sigmoid_kernel,
        out_shape=jax.ShapeDtypeStruct((folded_rows, F_eff), x.dtype),
        grid_spec=pltpu.PrefetchScalarGridSpec(
            num_scalar_prefetch=0,
            grid=grid,
            in_specs=[
                pl.BlockSpec((tile_r, F_eff), lambda i: (i, 0)),   # streamed input tiles
                pl.BlockSpec((1, F_eff), lambda i: (0, 0)),        # slope: resident block
                pl.BlockSpec(memory_space=pltpu.SMEM),             # beta scalar
            ],
            out_specs=pl.BlockSpec((tile_r, F_eff), lambda i: (i, 0)),
        ),
        compiler_params=pltpu.CompilerParams(
            dimension_semantics=("parallel",),   # shard row tiles across v7x TCs
            vmem_limit_bytes=vmem_limit,
        ),
        cost_estimate=cost,
    )(x_folded, slope_eff, beta_arr)

    return out_folded.reshape(orig_shape)


if __name__ == "__main__":
    key = jax.random.PRNGKey(0)
    B, T, F = 2, 8, 32          # in_features = 32
    x = jax.random.normal(key, (B, T, F), dtype=jnp.float32)

    # Deterministic parameter init, matching nn.Parameter(torch.ones(in_features))
    slope = jnp.ones((F,), dtype=jnp.float32)
    beta = 1.0

    out = learnable_sigmoid(x, slope, beta)
    out = jax.block_until_ready(out)

    # Reference check in plain JAX
    ref = beta * jax.nn.sigmoid(slope * x)
    assert out.shape == x.shape
    assert jnp.allclose(out, ref, atol=1e-6), "mismatch vs reference"

    print("KERNEL_OK")
</pallas_src>

<mosaic_0001>
module attributes {stable_mosaic.version = 11 : i64} {
  func.func @_learnable_sigmoid_kernel(%arg0: i32, %arg1: memref<8x128xf32, #tpu.memory_space<vmem>>, %arg2: memref<1x128xf32, #tpu.memory_space<vmem>>, %arg3: memref<1x1xf32, #tpu.memory_space<smem>>, %arg4: memref<8x128xf32, #tpu.memory_space<vmem>>) attributes {dimension_semantics = [#tpu.dimension_semantics<parallel>], iteration_bounds = array<i64: 1>, scalar_prefetch = 0 : i64, scratch_operands = 0 : i64, tpu.core_type = #tpu.core_type<tc>, window_params = [{transform_indices = @transform_0, window_bounds = array<i64: 8, 128>}, {pipeline_mode = #tpu.pipeline_mode<synchronous>, transform_indices = @transform_1, window_bounds = array<i64: 1, 128>}, {transform_indices = @transform_2, window_bounds = array<i64: 1, 1>}, {transform_indices = @transform_3, window_bounds = array<i64: 8, 128>}]} {
    %c0 = arith.constant 0 : index
    %c0_0 = arith.constant 0 : index
    %0 = memref.load %arg3[%c0, %c0_0] : memref<1x1xf32, #tpu.memory_space<smem>>
    %c0_1 = arith.constant 0 : index
    %c0_2 = arith.constant 0 : index
    %1 = vector.load %arg1[%c0_1, %c0_2] : memref<8x128xf32, #tpu.memory_space<vmem>>, vector<8x128xf32>
    %c0_3 = arith.constant 0 : index
    %c0_4 = arith.constant 0 : index
    %2 = vector.load %arg2[%c0_3, %c0_4] : memref<1x128xf32, #tpu.memory_space<vmem>>, vector<1x128xf32>
    %3 = vector.broadcast %2 : vector<1x128xf32> to vector<8x128xf32>
    %4 = arith.mulf %3, %1 : vector<8x128xf32>
    %cst = arith.constant 5.000000e-01 : f32
    %5 = vector.broadcast %cst : f32 to vector<8x128xf32>
    %6 = arith.mulf %5, %4 : vector<8x128xf32>
    %7 = math.tanh %6 : vector<8x128xf32>
    %cst_5 = arith.constant 1.000000e+00 : f32
    %8 = vector.broadcast %cst_5 : f32 to vector<8x128xf32>
    %9 = arith.addf %7, %8 : vector<8x128xf32>
    %cst_6 = arith.constant 5.000000e-01 : f32
    %10 = vector.broadcast %cst_6 : f32 to vector<8x128xf32>
    %11 = arith.mulf %10, %9 : vector<8x128xf32>
    %12 = vector.broadcast %0 : f32 to vector<8x128xf32>
    %13 = arith.mulf %12, %11 : vector<8x128xf32>
    %c0_7 = arith.constant 0 : index
    %c0_8 = arith.constant 0 : index
    %14 = vector.load %arg4[%c0_7, %c0_8] : memref<8x128xf32, #tpu.memory_space<vmem>>, vector<8x128xf32>
    tpu.vector_store %arg4[%c0_7, %c0_8], %13 {strides = array<i32>} : memref<8x128xf32, #tpu.memory_space<vmem>>, vector<8x128xf32>,
    return
  }
  func.func @transform_0(%arg0: i32) -> (i32, i32) {
    %c0_i32 = arith.constant 0 : i32
    %c0_i32_0 = arith.constant 0 : i32
    return %arg0, %c0_i32 : i32, i32
  }
  func.func @transform_1(%arg0: i32) -> (i32, i32) {
    %c0_i32 = arith.constant 0 : i32
    %c0_i32_0 = arith.constant 0 : i32
    %c0_i32_1 = arith.constant 0 : i32
    return %c0_i32, %c0_i32_0 : i32, i32
  }
  func.func @transform_2(%arg0: i32) -> (i32, i32) {
    %c0_i32 = arith.constant 0 : i32
    %c0_i32_0 = arith.constant 0 : i32
    %c0_i32_1 = arith.constant 0 : i32
    return %c0_i32, %c0_i32_0 : i32, i32
  }
  func.func @transform_3(%arg0: i32) -> (i32, i32) {
    %c0_i32 = arith.constant 0 : i32
    %c0_i32_0 = arith.constant 0 : i32
    return %arg0, %c0_i32 : i32, i32
  }
}

</mosaic_0001>

<llo_original>
// kernel: tpu_custom_call.1
$region0: #{tpu_custom_call.1}
  #allocation0 [shape = 'u32[]', space=smem, size = 0x4, offset = 0x4, fixed_abs, tag = 'smem constant byte address 0x4 - core index']
  #allocation1 [shape = 'u32[144,128]{1,0:T(1,128)}', space=vmem, size = 0x12000, scoped, tag = 'internal scratch']
  #allocation2 [shape = 'f32[1,1]{1,0:T(1,128)S(6)}', space=smem, size = 0x200, scoped, tag = 'scoped memory for tpu_custom_call.1']
  %s0 = inlined_call_operand.hbm [shape: f32[4,128], index: 0, kind: input, shape index: {}]
  %s1 = inlined_call_operand.vmem [shape: f32[1,128], index: 1, kind: input, shape index: {}]
  %s2 = inlined_call_operand.<no memory space> [shape: f32[1,1], index: 2, kind: input, shape index: {}]
  %s3 = inlined_call_operand.hbm [shape: f32[4,128], index: 3, kind: output, shape index: {}]
  %s4 = sld [smem:[#allocation0]]
  $region26: #{tpu_custom_call.1} parent=0
    _
  %s6 = ssub.s32 1, %s4
  %s7 = scalar_select 0, %s6, %s4
  %8 = sst [smem:[#allocation2]] %s2
  $region1: #{tpu_custom_call.1} parent=0
    #allocation3 [shape = 'u8[4096]{0}', space=vmem, size = 0x1000, scoped, tag = 'input window, operand 0, single buffered']
    #allocation4 [shape = 's32[1]{0}', space=sflag, size = 0x4, scoped, tag = 'scoped memory for tpu_custom_call.1']
    #allocation5 [shape = 's32[1]{0}', space=sflag, size = 0x4, scoped, tag = 'scoped memory for tpu_custom_call.1']
    #allocation6 [shape = 'u8[4096]{0}', space=vmem, size = 0x1000, scoped, tag = 'output window, operand 0, single buffered']
    %9 = vsyncpa [#allocation4], 0
    %10 = vsyncpa [#allocation5], 0
    // Predicated region
    $region2: #{tpu_custom_call.1} parent=1 // pred_check
      _
    $region3: #{tpu_custom_call.1} parent=1 // pred_check_branch
      %12 = sbr.rel (0) target = $region5
    $region4: #{tpu_custom_call.1} parent=1 // pred_region
      %s14 = ssub.s32 128, 64
      %15 = vsyncadd [#allocation4], %s14
      %s16 = sshll.u32 [#allocation3], 4
      %s17 = int_to_ptr.vmem [resolvable:$true] %s16
      %22 = dma.hbm_to_vmem [thread:$0]  %s0, 64, %s17, [#allocation4], 64, 64, 4
    $region5: #{tpu_custom_call.1} parent=1 // pred_fallthru
      _
    // Predicated region
    $region6: #{tpu_custom_call.1} parent=1 // pred_check
      _
    $region7: #{tpu_custom_call.1} parent=1 // pred_check_branch
      %24 = sbr.rel (0) target = $region9
    $region8: #{tpu_custom_call.1} parent=1 // pred_region
      _
    $region9: #{tpu_custom_call.1} parent=1 // pred_fallthru
      _
    // Predicated region
    $region10: #{tpu_custom_call.1} parent=1 // pred_check
      _
    $region11: #{tpu_custom_call.1} parent=1 // pred_check_branch
      %26 = sbr.rel (0) target = $region13
    $region12: #{tpu_custom_call.1} parent=1 // pred_region
      _
    $region13: #{tpu_custom_call.1} parent=1 // pred_fallthru
      _
    // Predicated region
    $region14: #{tpu_custom_call.1} parent=1 // pred_check
      _
    $region15: #{tpu_custom_call.1} parent=1 // pred_check_branch
      %28 = sbr.rel (0) target = $region17
    $region16: #{tpu_custom_call.1} parent=1 // pred_region
      %29 = dma.done [#allocation4], 128
    $region17: #{tpu_custom_call.1} parent=1 // pred_fallthru
      _
    %s30 = sld [smem:[#allocation2]]
    %v31 = vld [vmem:[#allocation3] sm:$0xff]
    %v32 = vld [vmem:[%s1] sm:$0x1]
    %v34 = vlaneseq
    %v35 = vshrl.u32 %v34, 7
    %v36 = vsub.s32 0, %v35
    %v37 = vrot.slane %v32, %v36
    %v39 = vmul.f32 %v37, %v31
    %v40 = vmul.f32 %v39, 0.5
    %v41 = vtanh.pop %v40
    %v42 = vadd.f32 %v41, 1.0
    %v43 = vmul.f32 %v42, 0.5
    %v44 = vstv %s30
    %v45 = vmul.f32 %v44, %v43
    %46 = vst [vmem:[#allocation6] sm:$0xff] %v45
    // Predicated region
    $region18: #{tpu_custom_call.1} parent=1 // pred_check
      _
    $region19: #{tpu_custom_call.1} parent=1 // pred_check_branch
      %48 = sbr.rel (0) target = $region21
    $region20: #{tpu_custom_call.1} parent=1 // pred_region
      %s50 = ssub.s32 128, 64
      %51 = vsyncadd [#allocation5], %s50
      %s52 = sshll.u32 [#allocation6], 4
      %s53 = int_to_ptr.vmem [resolvable:$true] %s52
      %58 = dma.vmem_to_hbm [thread:$0]  %s53, 64, %s3, [#allocation5], 64, 64, 4
    $region21: #{tpu_custom_call.1} parent=1 // pred_fallthru
      _
    // Predicated region
    $region22: #{tpu_custom_call.1} parent=1 // pred_check
      _
    $region23: #{tpu_custom_call.1} parent=1 // pred_check_branch
      %60 = sbr.rel (0) target = $region25
    $region24: #{tpu_custom_call.1} parent=1 // pred_region
      %61 = dma.done [#allocation5], 128
    $region25: #{tpu_custom_call.1} parent=1 // pred_fallthru
      _
    %62 = vsyncpa [#allocation4], 1
    %63 = vsyncpa [#allocation5], 1

</llo_original>
